<compile_context>
chip_gen: v5e
topology: v5e:2x2
jax: 0.10.0
libtpu: 0.0.40
codegen_flags: <defaults>
</compile_context>

<pallas_src>
import jax
import jax.numpy as jnp
from jax import lax
from jax.experimental import pallas as pl
from jax.experimental.pallas import tpu as pltpu

_EPS = 1e-08


def _dbl_kernel(a_ref, cn_ref, rn_ref, y_ref, out_ref):
    tm, n = y_ref.shape                        # TM rows this step, N columns
    row_off = pl.multiple_of(pl.program_id(0) * tm, tm)

    # Row window sliced from the resident (padded) A -- no duplicate stream.
    a_rows = a_ref[pl.ds(row_off, tm), :]      # (TM, D) native dtype (bf16 ok)
    a_cols = a_ref[pl.ds(0, n), :]             # (N,  D) real (un-padded) rows

    # Gram on the MXU, contracting last dims (no explicit A.T), f32 accumulate.
    gram = lax.dot_general(a_rows, a_cols,
                           dimension_numbers=(((1,), (1,)), ((), ())),
                           preferred_element_type=jnp.float32)      # (TM, N)

    # Hoisted norms: rn (TM, 1) block, cn (1, N) resident row vector.
    l2 = rn_ref[...] - 2.0 * gram + cn_ref[...]                     # (TM, N)
    l2 = jnp.maximum(l2, 0.0)   # clamp tiny negatives from cancellation

    # exp(-dist); zero the self-pair diagonal (== exp(-inf) in the reference).
    row_ids = row_off + lax.broadcasted_iota(jnp.int32, (tm, n), 0)
    col_ids = lax.broadcasted_iota(jnp.int32, (tm, n), 1)
    e = jnp.where(row_ids == col_ids, 0.0, jnp.exp(-l2))            # (TM, N)

    # Fused softmax + label-weighted row sum (no N x N sm/check temporaries).
    y = y_ref[...].astype(jnp.float32)
    denom = jnp.sum(e, axis=1, keepdims=True) + _EPS                # (TM, 1)
    num = jnp.sum(e * y, axis=1, keepdims=True)                     # (TM, 1)
    term = -jnp.log(num / denom + _EPS)                             # (TM, 1)

    # Mask padded rows of a possibly-partial last tile (where() also stops any
    # NaN coming from the garbage rows of a partial y block).
    valid = (row_off + lax.broadcasted_iota(jnp.int32, (tm, 1), 0)) < n
    out_ref[...] = jnp.where(valid, term, 0.0)


def _device_defaults():
    """Per-generation (tile_rows, vmem_limit_bytes); conservative fallback."""
    try:
        kind = jax.devices()[0].device_kind.lower()
    except Exception:
        kind = ""
    if ("v5" in kind) or ("v6" in kind):
        # 128 MiB VMEM parts: bigger row tiles, higher scoped-VMEM cap.
        return 512, 96 * 1024 * 1024
    # v7x (64 MiB per TensorCore, duplicated by the parallel row split) and
    # unknown chips: stay conservative.
    return 256, 48 * 1024 * 1024


def distance_based_logistic_loss(y_pred, y_true, num_pos: int, num_imgs: int,
                                 *, tile_rows=None, vmem_limit_bytes=None):
    """JAX/Pallas equivalent of DistanceBasedLogisticLoss.forward."""
    n = num_pos * num_imgs
    a = jnp.reshape(y_pred, (n, -1))      # keep caller's dtype (bf16 friendly)
    y = jnp.reshape(y_true, (n, n))
    d = a.shape[1]

    tr_def, vm_def = _device_defaults()
    if tile_rows is None:
        tile_rows = tr_def
    if vmem_limit_bytes is None:
        vmem_limit_bytes = vm_def

    # Row tile: whole array if small, else a multiple-of-8 tile.
    tm = n if n <= tile_rows else (tile_rows // 8) * 8
    num_blocks = pl.cdiv(n, tm)
    n_pad = num_blocks * tm

    # Hoisted squared norms: one XLA pass over A in f32.
    norms = jnp.sum(jnp.square(a.astype(jnp.float32)), axis=1)      # (N,)
    col_norms = norms.reshape(1, n)                                  # (1, N)
    row_norms = norms.reshape(n, 1)                                  # (N, 1)

    # Zero-pad A rows (and row_norms) to a multiple of TM so the in-kernel
    # pl.ds row slice of the resident A can never read out of bounds.
    if n_pad != n:
        a_res = jnp.pad(a, ((0, n_pad - n), (0, 0)))
        row_norms = jnp.pad(row_norms, ((0, n_pad - n), (0, 0)))
    else:
        a_res = a

    out = pl.pallas_call(
        _dbl_kernel,
        out_shape=jax.ShapeDtypeStruct((n, 1), jnp.float32),
        grid=(num_blocks,),
        in_specs=[
            # Resident A (padded): single whole-array VMEM copy, no double buf.
            pl.BlockSpec(memory_space=pltpu.MemorySpace.VMEM),
            # Column norms (1, N): tiny, resident in VMEM.
            pl.BlockSpec(memory_space=pltpu.MemorySpace.VMEM),
            # Row norms: one (TM, 1) block per row tile.
            pl.BlockSpec((tm, 1), lambda i: (i, 0)),
            # y_true: the dominant (TM, N) stream, auto double-buffered.
            pl.BlockSpec((tm, n), lambda i: (i, 0)),
        ],
        out_specs=pl.BlockSpec((tm, 1), lambda i: (i, 0)),
        compiler_params=pltpu.CompilerParams(
            dimension_semantics=("parallel",),      # v7x: 2 TCs split row tiles
            vmem_limit_bytes=vmem_limit_bytes,
        ),
    )(a_res, col_norms, row_norms, y)

    # One -log term per row; final reduction in the wrapper.
    return jnp.sum(out)


def _reference(y_pred, y_true, num_pos, num_imgs):
    """Pure-JAX reference mirroring the PyTorch code 1:1 (sanity check)."""
    n = num_pos * num_imgs
    eps = 1e-08
    A = jnp.reshape(y_pred, (n, -1)).astype(jnp.float32)
    na = jnp.sum(jnp.square(A), axis=1)[:, None]
    l2norm = na - 2.0 * (A @ A.T) + na.T
    l2norm = jnp.where(jnp.eye(n, dtype=bool), jnp.inf, l2norm)
    e = jnp.exp(-l2norm)
    sm = e / (jnp.sum(e, axis=1, keepdims=True) + eps)
    check = sm * jnp.reshape(y_true, (n, n)).astype(jnp.float32)
    return jnp.sum(-jnp.log(jnp.sum(check, axis=1) + eps))


if __name__ == "__main__":
    num_pos, num_imgs = 4, 2
    N = num_pos * num_imgs          # tot_patch = 8
    D = 32                          # flattened patch feature dim

    key = jax.random.PRNGKey(0)
    k_pred, _ = jax.random.split(key)
    # Small-scale features so exp(-dist) is non-degenerate; bf16 native dtype
    # exercises the reduced-traffic / bf16-MXU path.
    y_pred = (0.1 * jax.random.normal(k_pred, (N, D), dtype=jnp.float32)
              ).astype(jnp.bfloat16)

    # Deterministic labels: patches at the same position across images are
    # positives (excluding self-pairs).
    pos_id = jnp.arange(N) % num_pos
    same_pos = pos_id[:, None] == pos_id[None, :]
    not_self = ~jnp.eye(N, dtype=bool)
    y_true = (same_pos & not_self).astype(jnp.bfloat16)     # (N, N)

    loss = jax.block_until_ready(
        distance_based_logistic_loss(y_pred, y_true, num_pos, num_imgs))
    ref = jax.block_until_ready(_reference(y_pred, y_true, num_pos, num_imgs))
    assert jnp.allclose(loss, ref, rtol=1e-4, atol=1e-4), (loss, ref)

    print("KERNEL_OK")
</pallas_src>

<mosaic_0001>
module attributes {stable_mosaic.version = 11 : i64} {
  func.func @_dbl_kernel(%arg0: i32, %arg1: memref<8x32xbf16, #tpu.memory_space<vmem>>, %arg2: memref<1x8xf32, #tpu.memory_space<vmem>>, %arg3: memref<8x1xf32, #tpu.memory_space<vmem>>, %arg4: memref<8x8xbf16, #tpu.memory_space<vmem>>, %arg5: memref<8x1xf32, #tpu.memory_space<vmem>>) attributes {dimension_semantics = [#tpu.dimension_semantics<parallel>], iteration_bounds = array<i64: 1>, scalar_prefetch = 0 : i64, scratch_operands = 0 : i64, tpu.core_type = #tpu.core_type<tc>, window_params = [{pipeline_mode = #tpu.pipeline_mode<synchronous>, transform_indices = @transform_0, window_bounds = array<i64: 8, 32>}, {pipeline_mode = #tpu.pipeline_mode<synchronous>, transform_indices = @transform_1, window_bounds = array<i64: 1, 8>}, {transform_indices = @transform_2, window_bounds = array<i64: 8, 1>}, {transform_indices = @transform_3, window_bounds = array<i64: 8, 8>}, {transform_indices = @transform_4, window_bounds = array<i64: 8, 1>}]} {
    %c8_i32 = arith.constant 8 : i32
    %0 = arith.muli %arg0, %c8_i32 : i32
    %1 = tpu.assume_multiple %0, 8 : i32
    %2 = arith.index_cast %1 : i32 to index
    %c0 = arith.constant 0 : index
    %3 = vector.load %arg1[%2, %c0] : memref<8x32xbf16, #tpu.memory_space<vmem>>, vector<8x32xbf16>
    %c0_0 = arith.constant 0 : index
    %c0_1 = arith.constant 0 : index
    %4 = vector.load %arg1[%c0_0, %c0_1] : memref<8x32xbf16, #tpu.memory_space<vmem>>, vector<8x32xbf16>
    %cst = arith.constant dense<0.000000e+00> : vector<8x8xf32>
    %5 = tpu.matmul %3, %4, %cst {dimension_numbers = #tpu.dot_dimension_numbers<[1], [1], [0], [0], [0, 0, 1, 0], [], []>} : vector<8x32xbf16>, vector<8x32xbf16>, vector<8x8xf32> -> vector<8x8xf32>
    %c0_2 = arith.constant 0 : index
    %c0_3 = arith.constant 0 : index
    %6 = vector.load %arg3[%c0_2, %c0_3] : memref<8x1xf32, #tpu.memory_space<vmem>>, vector<8x1xf32>
    %cst_4 = arith.constant 2.000000e+00 : f32
    %7 = vector.broadcast %cst_4 : f32 to vector<8x8xf32>
    %8 = arith.mulf %7, %5 : vector<8x8xf32>
    %9 = vector.broadcast %6 : vector<8x1xf32> to vector<8x8xf32>
    %10 = arith.subf %9, %8 : vector<8x8xf32>
    %c0_5 = arith.constant 0 : index
    %c0_6 = arith.constant 0 : index
    %11 = vector.load %arg2[%c0_5, %c0_6] : memref<1x8xf32, #tpu.memory_space<vmem>>, vector<1x8xf32>
    %12 = vector.broadcast %11 : vector<1x8xf32> to vector<8x8xf32>
    %13 = arith.addf %10, %12 : vector<8x8xf32>
    %cst_7 = arith.constant 0.000000e+00 : f32
    %14 = vector.broadcast %cst_7 : f32 to vector<8x8xf32>
    %15 = arith.maximumf %13, %14 : vector<8x8xf32>
    %16 = tpu.iota {dimensions = array<i32: 0>} : vector<8x8xi32>
    %17 = vector.broadcast %1 : i32 to vector<8x8xi32>
    %18 = arith.addi %17, %16 : vector<8x8xi32>
    %19 = tpu.iota {dimensions = array<i32: 1>} : vector<8x8xi32>
    %20 = arith.cmpi eq, %18, %19 : vector<8x8xi32>
    %cst_8 = arith.constant 0.000000e+00 : f32
    %21 = vector.broadcast %cst_8 : f32 to vector<8x8xf32>
    %22 = arith.subf %21, %15 : vector<8x8xf32>
    %23 = math.exp %22 : vector<8x8xf32>
    %cst_9 = arith.constant 0.000000e+00 : f32
    %24 = vector.broadcast %cst_9 : f32 to vector<8x8xf32>
    %25 = arith.select %20, %24, %23 : vector<8x8xi1>, vector<8x8xf32>
    %c0_10 = arith.constant 0 : index
    %c0_11 = arith.constant 0 : index
    %26 = vector.load %arg4[%c0_10, %c0_11] : memref<8x8xbf16, #tpu.memory_space<vmem>>, vector<8x8xbf16>
    %27 = arith.extf %26 : vector<8x8xbf16> to vector<8x8xf32>
    %cst_12 = arith.constant dense<0.000000e+00> : vector<8xf32>
    %28 = vector.multi_reduction <add>, %25, %cst_12 [1] : vector<8x8xf32> to vector<8xf32>
    %29 = vector.shape_cast %28 : vector<8xf32> to vector<8x1xf32>
    %cst_13 = arith.constant 9.99999993E-9 : f32
    %30 = vector.broadcast %cst_13 : f32 to vector<8x1xf32>
    %31 = arith.addf %29, %30 : vector<8x1xf32>
    %32 = arith.mulf %25, %27 : vector<8x8xf32>
    %cst_14 = arith.constant dense<0.000000e+00> : vector<8xf32>
    %33 = vector.multi_reduction <add>, %32, %cst_14 [1] : vector<8x8xf32> to vector<8xf32>
    %34 = vector.shape_cast %33 : vector<8xf32> to vector<8x1xf32>
    %35 = arith.divf %34, %31 : vector<8x1xf32>
    %cst_15 = arith.constant 9.99999993E-9 : f32
    %36 = vector.broadcast %cst_15 : f32 to vector<8x1xf32>
    %37 = arith.addf %35, %36 : vector<8x1xf32>
    %38 = math.log %37 : vector<8x1xf32>
    %cst_16 = arith.constant 0.000000e+00 : f32
    %39 = vector.broadcast %cst_16 : f32 to vector<8x1xf32>
    %40 = arith.subf %39, %38 : vector<8x1xf32>
    %41 = tpu.iota {dimensions = array<i32: 0>} : vector<8x1xi32>
    %42 = vector.broadcast %1 : i32 to vector<8x1xi32>
    %43 = arith.addi %42, %41 : vector<8x1xi32>
    %c8_i32_17 = arith.constant 8 : i32
    %44 = vector.broadcast %c8_i32_17 : i32 to vector<8x1xi32>
    %45 = arith.cmpi slt, %43, %44 : vector<8x1xi32>
    %cst_18 = arith.constant 0.000000e+00 : f32
    %46 = vector.broadcast %cst_18 : f32 to vector<8x1xf32>
    %47 = arith.select %45, %40, %46 : vector<8x1xi1>, vector<8x1xf32>
    %c0_19 = arith.constant 0 : index
    %c0_20 = arith.constant 0 : index
    %48 = vector.load %arg5[%c0_19, %c0_20] : memref<8x1xf32, #tpu.memory_space<vmem>>, vector<8x1xf32>
    tpu.vector_store %arg5[%c0_19, %c0_20], %47 {strides = array<i32>} : memref<8x1xf32, #tpu.memory_space<vmem>>, vector<8x1xf32>,
    return
  }
  func.func @transform_0(%arg0: i32) -> (i32, i32) {
    %c0_i32 = arith.constant 0 : i32
    %c0_i32_0 = arith.constant 0 : i32
    %c0_i32_1 = arith.constant 0 : i32
    return %c0_i32, %c0_i32_0 : i32, i32
  }
  func.func @transform_1(%arg0: i32) -> (i32, i32) {
    %c0_i32 = arith.constant 0 : i32
    %c0_i32_0 = arith.constant 0 : i32
    %c0_i32_1 = arith.constant 0 : i32
    return %c0_i32, %c0_i32_0 : i32, i32
  }
  func.func @transform_2(%arg0: i32) -> (i32, i32) {
    %c0_i32 = arith.constant 0 : i32
    %c0_i32_0 = arith.constant 0 : i32
    return %arg0, %c0_i32 : i32, i32
  }
  func.func @transform_3(%arg0: i32) -> (i32, i32) {
    %c0_i32 = arith.constant 0 : i32
    %c0_i32_0 = arith.constant 0 : i32
    return %arg0, %c0_i32 : i32, i32
  }
  func.func @transform_4(%arg0: i32) -> (i32, i32) {
    %c0_i32 = arith.constant 0 : i32
    %c0_i32_0 = arith.constant 0 : i32
    return %arg0, %c0_i32 : i32, i32
  }
}

</mosaic_0001>

<llo_original>
// kernel: tpu_custom_call.1
$region0: #{tpu_custom_call.1}
  #allocation0 [shape = 'u32[]', space=smem, size = 0x4, offset = 0x4, fixed_abs, tag = 'smem constant byte address 0x4 - core index']
  #allocation1 [shape = 'u32[72,128]{1,0:T(1,128)}', space=vmem, size = 0x9000, scoped, tag = 'internal scratch']
  %s0 = inlined_call_operand.vmem [shape: bf16[8,32], index: 0, kind: input, shape index: {}]
  %s1 = inlined_call_operand.vmem [shape: f32[1,8], index: 1, kind: input, shape index: {}]
  %s2 = inlined_call_operand.vmem [shape: f32[8,1], index: 2, kind: input, shape index: {}]
  %s3 = inlined_call_operand.vmem [shape: bf16[8,8], index: 3, kind: input, shape index: {}]
  %s4 = inlined_call_operand.vmem [shape: f32[8,1], index: 4, kind: output, shape index: {}]
  %s5 = sld [smem:[#allocation0]]
  $region26: #{tpu_custom_call.1} parent=0
    _
  %s7 = ssub.s32 1, %s5
  %s8 = scalar_select 0, %s7, %s5
  // Predicated region
  $region2: #{tpu_custom_call.1} parent=0 // pred_check
    _
  $region3: #{tpu_custom_call.1} parent=0 // pred_check_branch
    %10 = sbr.rel (0) target = $region5
  $region4: #{tpu_custom_call.1} parent=0 // pred_region
    _
  $region5: #{tpu_custom_call.1} parent=0 // pred_fallthru
    _
  // Predicated region
  $region6: #{tpu_custom_call.1} parent=0 // pred_check
    _
  $region7: #{tpu_custom_call.1} parent=0 // pred_check_branch
    %12 = sbr.rel (0) target = $region9
  $region8: #{tpu_custom_call.1} parent=0 // pred_region
    _
  $region9: #{tpu_custom_call.1} parent=0 // pred_fallthru
    _
  // Predicated region
  $region10: #{tpu_custom_call.1} parent=0 // pred_check
    _
  $region11: #{tpu_custom_call.1} parent=0 // pred_check_branch
    %14 = sbr.rel (0) target = $region13
  $region12: #{tpu_custom_call.1} parent=0 // pred_region
    _
  $region13: #{tpu_custom_call.1} parent=0 // pred_fallthru
    _
  // Predicated region
  $region14: #{tpu_custom_call.1} parent=0 // pred_check
    _
  $region15: #{tpu_custom_call.1} parent=0 // pred_check_branch
    %16 = sbr.rel (0) target = $region17
  $region16: #{tpu_custom_call.1} parent=0 // pred_region
    _
  $region17: #{tpu_custom_call.1} parent=0 // pred_fallthru
    _
  %s18 = smul.u32 0, 8
  %s19 = sshra.s32 %s18, 3
  %s20 = sand.u32 %s18, 7
  %s21 = smul.addr %s19, 4
  %s22 = scalar_lea.vmem %s0, %s21
  %v23 = vld [vmem:[%s22] sm:$0xf]
  %v24 = vld [vmem:[%s0] sm:$0xf]
  %vm25 = vcmask 261120
  %v27 = vsel %vm25, %v23, 0
  %v30 = vsel %vm25, %v24, 0
  %32 = vmatpush.bf16.xpose.msra.mxu0 0
  %33 = vmatpush.bf16.xpose.msra.mxu0 0
  %34 = vmatpush.bf16.xpose.msra.mxu0 0
  %35 = vmatpush.bf16.xpose.msra.mxu0 0
  %36 = vmatpush.bf16.xpose.msra.mxu0 0
  %37 = vmatpush.bf16.xpose.msra.mxu0 0
  %38 = vmatpush.bf16.xpose.msra.mxu0 0
  %39 = vmatpush.bf16.xpose.msra.mxu0 %v30
  %40 = vmatmul.bf16.gmra.mxu0 %v27
  %v41 = vpop.f32.mrf.mxu0
  %v42 = vadd.f32 0.0, %v41
  %v43 = vpop.f32.mrf.mxu0
  %44 = vdwg.mxu0
  %v45 = vld [vmem:[%s2] sm:$0xff]
  %v46 = vmul.f32 %v42, 2.0
  %48 = vset.pattern.permute.xlu0 0
  %49 = vperm.xlu0 %48, %v45
  %v50 = vpop.permute.xlu0 %49
  %v52 = vsub.f32 %v50, %v46
  %v53 = vld [vmem:[%s1] sm:$0x1]
  %v55 = vperm.slane %v53, 0
  %v57 = vadd.f32 %v52, %v55
  %v58 = vmax.f32 %v57, 0.0
  %v59 = vlaneseq
  %v60 = vshrl.u32 %v59, 7
  %v61 = vstv %s18
  %v62 = vadd.s32 %v61, %v60
  %v63 = vlaneseq
  %v64 = vand.u32 %v63, 127
  %vm65 = vcmp.eq.s32.totalorder %v62, %v64
  %v66 = vsub.f32 0.0, %v58
  %v67 = vmul.f32 %v66, 1.442695
  %v68 = vpow.pop %v67
  %v69 = vsel %vm65, 0.0, %v68
  %v70 = vld [vmem:[%s3] sm:$0xf]
  %v71 = vunpack.c.l.bf16 %v70
  %vm72 = vcmask 64512
  %v73 = vsel %vm72, %v69, 0.0
  %74 = vadd.xlane.f32.xlu0 %v73
  %v75 = vpop.xlane.xlu0 %74
  %v76 = vadd.f32 %v75, 1e-08
  %v77 = vmul.f32 %v69, %v71
  %v78 = vsel %vm72, %v77, 0.0
  %79 = vadd.xlane.f32.xlu0 %v78
  %v80 = vpop.xlane.xlu0 %79
  %v81 = vrcp.pop %v76
  %v82 = vmul.f32 %v76, %v81
  %v83 = vsub.f32 1.0, %v82
  %v84 = vmul.f32 %v81, %v83
  %v85 = vadd.f32 %v81, %v84
  %vm86 = vweird.f32 %v76
  %vm87 = vweird.f32 %v81
  %vm88 = vmor %vm86, %vm87
  %v89 = vsel %vm88, %v81, %v85
  %v90 = vand.u32 2147483647, %v76
  %vm91 = vcmp.eq.f32.partialorder %v90, 8.507059e+37
  %v92 = vand.u32 %v76, 2147483648
  %v93 = vor.u32 1.1754944e-38, %v92
  %v94 = vsel %vm91, %v93, %v89
  %v95 = vmul.f32 %v80, %v94
  %v96 = vadd.f32 %v95, 1e-08
  %v97 = vlog2.pop %v96
  %v98 = vmul.f32 %v97, 0.6931472
  %v99 = vsub.f32 0.0, %v98
  %vm100 = vcmp.lt.s32.totalorder %v62, 8
  %v101 = vsel %vm100, %v99, 0.0
  %vm102 = vcmask 7168
  %103 = vst.msk [vmem:[%s4] sm:$0xff] %vm102, %v101
  // Predicated region
  $region18: #{tpu_custom_call.1} parent=0 // pred_check
    _
  $region19: #{tpu_custom_call.1} parent=0 // pred_check_branch
    %105 = sbr.rel (0) target = $region21
  $region20: #{tpu_custom_call.1} parent=0 // pred_region
    _
  $region21: #{tpu_custom_call.1} parent=0 // pred_fallthru
    _
  // Predicated region
  $region22: #{tpu_custom_call.1} parent=0 // pred_check
    _
  $region23: #{tpu_custom_call.1} parent=0 // pred_check_branch
    %107 = sbr.rel (0) target = $region25
  $region24: #{tpu_custom_call.1} parent=0 // pred_region
    _
  $region25: #{tpu_custom_call.1} parent=0 // pred_fallthru
    _

</llo_original>
